<compile_context>
chip_gen: v7x
topology: tpu7x:2x2x1
jax: 0.10.0
libtpu: 0.0.40
codegen_flags: <defaults>
</compile_context>

<pallas_src>
import functools

import jax
import jax.numpy as jnp
from jax.experimental import pallas as pl
from jax.experimental.pallas import tpu as pltpu


def _round_up(x, m):
    return ((x + m - 1) // m) * m


def _cdiv(a, b):
    return (a + b - 1) // b


def gcn_kernel(alpha_ref, adj_ref, xw_ref, o_ref, *,
               n, tk, xw_resident, mask_last_k):
    """One (row-tile i, contraction-tile k) step of PReLU(adjacency @ xw)."""
    k = pl.program_id(1)
    nk = pl.num_programs(1)

    @pl.when(k == 0)
    def _init():
        o_ref[...] = jnp.zeros_like(o_ref)

    if xw_resident:
        # Whole xw lives in VMEM (constant block index -> fetched once for the whole
        # grid); slice out the current contraction window.
        b = xw_ref[pl.ds(pl.multiple_of(k * tk, tk), tk), :]
    else:
        b = xw_ref[...]

    def accumulate(mask_cols):
        a = adj_ref[...]
        if mask_cols:
            # The last K tile overhangs the array; out-of-bounds reads are undefined,
            # so zero the invalid columns before they enter the contraction.
            col = k * tk + jax.lax.broadcasted_iota(jnp.int32, a.shape, 1)
            a = jnp.where(col < n, a, jnp.zeros_like(a))
        o_ref[...] += jnp.dot(a, b, preferred_element_type=jnp.float32)

    if mask_last_k:
        # Pay the masking VPU work only on the ragged last K tile.
        @pl.when(k < nk - 1)
        def _hot():
            accumulate(False)

        @pl.when(k == nk - 1)
        def _ragged():
            accumulate(True)
    else:
        accumulate(False)

    @pl.when(k == nk - 1)
    def _finalize():
        alpha = alpha_ref[0, 0]            # scalar SMEM read, off the hot path
        y = o_ref[...]
        o_ref[...] = jnp.where(y > 0, y, alpha * y)   # PReLU
        # dropout with p=0 is the identity.
        # TODO(synk): stochastic dropout (p > 0) would need pltpu.prng_random_bits.


_TM_CAP = 512                       # output-row tile cap
_TK_CAP = 2048                      # contraction tile cap (lanes)
_XW_RESIDENT_BYTES = 12 * 2**20     # resident-xw budget (safe under v7x VMEM)


@functools.partial(jax.jit, static_argnames=("compute_dtype",))
def graph_convolution(graph, adjacency, weight, prelu_alpha, compute_dtype=None):
    """graph: [N, Din], adjacency: [N, N], weight: [Demb, Din] (PyTorch Linear layout).

    compute_dtype=None streams adjacency at its native dtype (no extra pad/cast pass).
    Passing e.g. jnp.bfloat16 casts adjacency per call; hoist that cast out of the call
    if adjacency is reused across many calls.
    """
    n = adjacency.shape[0]
    demb = weight.shape[0]
    out_dtype = graph.dtype

    if compute_dtype is not None:
        adjacency = adjacency.astype(compute_dtype)
    cdt = adjacency.dtype
    itemsize = jnp.dtype(cdt).itemsize

    # Fold the tiny Linear (K = Din, e.g. 2) into the node features outside the kernel
    # (associativity): adjacency @ (graph @ W^T) == (adjacency @ graph) @ W^T.
    xw = jnp.dot(graph, weight.T, preferred_element_type=jnp.float32)   # [N, Demb]

    # Lane-dense output width (unmasked stores); multiple of 256 once past 128 so larger
    # feature dims still fill v6e/v7x's 256-wide MXU.
    e_pad = _round_up(demb, 128) if demb <= 128 else _round_up(demb, 256)

    # --- tile selection ------------------------------------------------------------
    sub = 8 if itemsize >= 4 else (16 if itemsize == 2 else 32)
    if n > _TM_CAP:
        tm = _TM_CAP
    elif n >= 256:
        # Keep >=2 row tiles so the "parallel" axis can use both v7x TensorCores.
        tm = _round_up(_cdiv(n, 2), sub)
    else:
        tm = n                                  # single full-size block (layout-legal)
    tk = _TK_CAP if n > _TK_CAP else n          # multiple of 128, or the full dim
    grid_m = _cdiv(n, tm)
    grid_k = _cdiv(n, tk)
    k_pad = grid_k * tk
    mask_last_k = (grid_k > 1) and (n % tk != 0)
    xw_resident = (grid_k > 1) and (k_pad * e_pad * itemsize <= _XW_RESIDENT_BYTES)

    # xw is tiny (N x Demb); padding/casting it is negligible (unlike adjacency).
    xw_p = jnp.zeros((k_pad, e_pad), cdt).at[:n, :demb].set(xw.astype(cdt))
    alpha = jnp.asarray(prelu_alpha, jnp.float32).reshape(1, 1)

    if xw_resident:
        xw_spec = pl.BlockSpec((k_pad, e_pad), lambda i, k: (0, 0))
    else:
        xw_spec = pl.BlockSpec((tk, e_pad), lambda i, k: (k, 0))

    # VMEM budget: double-buffered adjacency tile + xw + resident output block, with
    # headroom, kept below v7x's 64 MiB physical VMEM (v5e/v6e have 128 MiB).
    est = (2 * tm * tk * itemsize
           + 2 * (k_pad if xw_resident else tk) * e_pad * itemsize
           + 2 * tm * e_pad * 4)
    vmem_limit = int(min(56 * 2**20, max(32 * 2**20, 2 * est)))

    kernel = functools.partial(gcn_kernel, n=n, tk=tk,
                               xw_resident=xw_resident, mask_last_k=mask_last_k)
    xw_read_bytes = (k_pad if xw_resident else grid_m * k_pad) * e_pad * itemsize

    out = pl.pallas_call(
        kernel,
        out_shape=jax.ShapeDtypeStruct((n, e_pad), jnp.float32),
        grid_spec=pltpu.PrefetchScalarGridSpec(
            num_scalar_prefetch=0,
            grid=(grid_m, grid_k),
            in_specs=[
                pl.BlockSpec(memory_space=pltpu.SMEM),          # PReLU alpha scalar
                pl.BlockSpec((tm, tk), lambda i, k: (i, k)),    # adjacency tile (native dtype)
                xw_spec,                                        # graph @ W^T (padded)
            ],
            out_specs=pl.BlockSpec((tm, e_pad), lambda i, k: (i, 0)),
        ),
        compiler_params=pltpu.CompilerParams(
            dimension_semantics=("parallel", "arbitrary"),
            vmem_limit_bytes=vmem_limit,
        ),
        cost_estimate=pl.CostEstimate(
            flops=2 * n * n * e_pad,
            transcendentals=0,
            bytes_accessed=n * n * itemsize + xw_read_bytes + n * e_pad * 4,
        ),
    )(alpha, adjacency, xw_p)

    return out[:, :demb].astype(out_dtype)


def reference(graph, adjacency, weight, prelu_alpha):
    y = (adjacency @ graph) @ weight.T
    return jnp.where(y > 0, y, prelu_alpha * y)


def _make_inputs(key, n, in_dims, emb_dims):
    k1, k2, k3 = jax.random.split(key, 3)
    graph = jax.random.normal(k1, (n, in_dims), dtype=jnp.float32)
    adjacency = jax.random.uniform(k2, (n, n), dtype=jnp.float32)
    bound = 1.0 / (in_dims ** 0.5)     # nn.Linear default init range
    weight = jax.random.uniform(k3, (emb_dims, in_dims), dtype=jnp.float32,
                                minval=-bound, maxval=bound)
    return graph, adjacency, weight


if __name__ == "__main__":
    root = jax.random.PRNGKey(0)
    key_small, key_big = jax.random.split(root, 2)
    prelu_alpha = 0.25                  # nn.PReLU() default init

    # 1) Module-default shapes (N=8, in_dims=2, embedding_dims=16): single-tile grid,
    #    exact f32 path, native-dtype adjacency (no pad/cast pass).
    g, a, w = _make_inputs(key_small, 8, 2, 16)
    ref = reference(g, a, w, prelu_alpha)
    out = jax.block_until_ready(graph_convolution(g, a, w, prelu_alpha))
    assert out.shape == (8, 16)
    assert jnp.allclose(out, ref, atol=1e-5, rtol=1e-5), "f32 single-tile mismatch"

    # 2) Optional bf16 adjacency fast path (per-call cast; hoist when adjacency is reused).
    out_bf16 = jax.block_until_ready(
        graph_convolution(g, a, w, prelu_alpha, compute_dtype=jnp.bfloat16))
    assert out_bf16.shape == (8, 16)
    assert jnp.allclose(out_bf16, ref, atol=5e-2, rtol=5e-2), "bf16 mismatch"

    # 3) Multi-tile validation (per correctness review): 5 row tiles, 2 contraction tiles
    #    with a ragged last tile, resident xw, padded feature dim — exercises the
    #    init/accumulate/finalize path and the in-kernel edge masking.
    g2, a2, w2 = _make_inputs(key_big, 2200, 2, 200)
    ref2 = reference(g2, a2, w2, prelu_alpha)
    out2 = jax.block_until_ready(graph_convolution(g2, a2, w2, prelu_alpha))
    assert out2.shape == (2200, 200)
    assert bool(jnp.all(jnp.isfinite(out2))), "non-finite values in multi-tile output"
    rel = float(jnp.max(jnp.abs(out2 - ref2)) / (jnp.max(jnp.abs(ref2)) + 1e-6))
    assert rel < 2e-2, f"multi-tile relative error too large: {rel}"

    print("KERNEL_OK")
</pallas_src>

<mosaic_0001>
module attributes {stable_mosaic.version = 11 : i64} {
  func.func @gcn_kernel(%arg0: i32, %arg1: i32, %arg2: memref<1x1xf32, #tpu.memory_space<smem>>, %arg3: memref<8x8xf32, #tpu.memory_space<vmem>>, %arg4: memref<8x128xf32, #tpu.memory_space<vmem>>, %arg5: memref<8x128xf32, #tpu.memory_space<vmem>>) attributes {dimension_semantics = [#tpu.dimension_semantics<parallel>, #tpu.dimension_semantics<arbitrary>], iteration_bounds = array<i64: 1, 1>, scalar_prefetch = 0 : i64, scratch_operands = 0 : i64, tpu.core_type = #tpu.core_type<tc>, window_params = [{transform_indices = @transform_0, window_bounds = array<i64: 1, 1>}, {transform_indices = @transform_1, window_bounds = array<i64: 8, 8>}, {transform_indices = @transform_2, window_bounds = array<i64: 8, 128>}, {transform_indices = @transform_3, window_bounds = array<i64: 8, 128>}]} {
    %c0_i32 = arith.constant 0 : i32
    %0 = arith.cmpi eq, %arg1, %c0_i32 : i32
    %1 = arith.extui %0 : i1 to i32
    %c0_i32_0 = arith.constant 0 : i32
    %2 = arith.cmpi ne, %1, %c0_i32_0 : i32
    scf.if %2 {
      %cst_10 = arith.constant 0.000000e+00 : f32
      %12 = vector.broadcast %cst_10 : f32 to vector<8x128xf32>
      %c0_11 = arith.constant 0 : index
      %c0_12 = arith.constant 0 : index
      %13 = vector.load %arg5[%c0_11, %c0_12] : memref<8x128xf32, #tpu.memory_space<vmem>>, vector<8x128xf32>
      tpu.vector_store %arg5[%c0_11, %c0_12], %12 {strides = array<i32>} : memref<8x128xf32, #tpu.memory_space<vmem>>, vector<8x128xf32>,
    } else {
    }
    %c0 = arith.constant 0 : index
    %c0_1 = arith.constant 0 : index
    %3 = vector.load %arg4[%c0, %c0_1] : memref<8x128xf32, #tpu.memory_space<vmem>>, vector<8x128xf32>
    %c0_2 = arith.constant 0 : index
    %c0_3 = arith.constant 0 : index
    %4 = vector.load %arg3[%c0_2, %c0_3] : memref<8x8xf32, #tpu.memory_space<vmem>>, vector<8x8xf32>
    %c0_4 = arith.constant 0 : index
    %c0_5 = arith.constant 0 : index
    %5 = vector.load %arg5[%c0_4, %c0_5] : memref<8x128xf32, #tpu.memory_space<vmem>>, vector<8x128xf32>
    %cst = arith.constant dense<0.000000e+00> : vector<8x128xf32>
    %6 = tpu.matmul %4, %3, %cst {dimension_numbers = #tpu.dot_dimension_numbers<[1], [0], [0], [1], [0, 0, 1, 1], [], []>} : vector<8x8xf32>, vector<8x128xf32>, vector<8x128xf32> -> vector<8x128xf32>
    %7 = arith.addf %5, %6 : vector<8x128xf32>
    %c0_6 = arith.constant 0 : index
    %c0_7 = arith.constant 0 : index
    %8 = vector.load %arg5[%c0_6, %c0_7] : memref<8x128xf32, #tpu.memory_space<vmem>>, vector<8x128xf32>
    tpu.vector_store %arg5[%c0_6, %c0_7], %7 {strides = array<i32>} : memref<8x128xf32, #tpu.memory_space<vmem>>, vector<8x128xf32>,
    %c0_i32_8 = arith.constant 0 : i32
    %9 = arith.cmpi eq, %arg1, %c0_i32_8 : i32
    %10 = arith.extui %9 : i1 to i32
    %c0_i32_9 = arith.constant 0 : i32
    %11 = arith.cmpi ne, %10, %c0_i32_9 : i32
    scf.if %11 {
      %c0_10 = arith.constant 0 : index
      %c0_11 = arith.constant 0 : index
      %12 = memref.load %arg2[%c0_10, %c0_11] : memref<1x1xf32, #tpu.memory_space<smem>>
      %c0_12 = arith.constant 0 : index
      %c0_13 = arith.constant 0 : index
      %13 = vector.load %arg5[%c0_12, %c0_13] : memref<8x128xf32, #tpu.memory_space<vmem>>, vector<8x128xf32>
      %cst_14 = arith.constant 0.000000e+00 : f32
      %14 = vector.broadcast %cst_14 : f32 to vector<8x128xf32>
      %15 = arith.cmpf ogt, %13, %14 : vector<8x128xf32>
      %16 = vector.broadcast %12 : f32 to vector<8x128xf32>
      %17 = arith.mulf %16, %13 : vector<8x128xf32>
      %18 = arith.select %15, %13, %17 : vector<8x128xi1>, vector<8x128xf32>
      %c0_15 = arith.constant 0 : index
      %c0_16 = arith.constant 0 : index
      %19 = vector.load %arg5[%c0_15, %c0_16] : memref<8x128xf32, #tpu.memory_space<vmem>>, vector<8x128xf32>
      tpu.vector_store %arg5[%c0_15, %c0_16], %18 {strides = array<i32>} : memref<8x128xf32, #tpu.memory_space<vmem>>, vector<8x128xf32>,
    } else {
    }
    return
  }
  func.func @transform_0(%arg0: i32, %arg1: i32) -> (i32, i32) {
    %c0_i32 = arith.constant 0 : i32
    %c0_i32_0 = arith.constant 0 : i32
    %c0_i32_1 = arith.constant 0 : i32
    return %c0_i32, %c0_i32_0 : i32, i32
  }
  func.func @transform_1(%arg0: i32, %arg1: i32) -> (i32, i32) {
    %c0_i32 = arith.constant 0 : i32
    return %arg0, %arg1 : i32, i32
  }
  func.func @transform_2(%arg0: i32, %arg1: i32) -> (i32, i32) {
    %c0_i32 = arith.constant 0 : i32
    %c0_i32_0 = arith.constant 0 : i32
    return %arg1, %c0_i32 : i32, i32
  }
  func.func @transform_3(%arg0: i32, %arg1: i32) -> (i32, i32) {
    %c0_i32 = arith.constant 0 : i32
    %c0_i32_0 = arith.constant 0 : i32
    return %arg0, %c0_i32 : i32, i32
  }
}

</mosaic_0001>

<llo_original>
// kernel: graph_convolution.1
$region0: #{graph_convolution.1}
  #allocation0 [shape = 'u32[]', space=smem, size = 0x4, offset = 0x4, fixed_abs, tag = 'smem constant byte address 0x4 - core index']
  #allocation1 [shape = 'u32[144,128]{1,0:T(1,128)}', space=vmem, size = 0x12000, scoped, tag = 'internal scratch']
  #allocation2 [shape = 'f32[1,1]{1,0:T(1,128)S(6)}', space=smem, size = 0x200, scoped, tag = 'scoped memory for graph_convolution.1']
  %s0 = inlined_call_operand.<no memory space> [shape: f32[1,1], index: 0, kind: input, shape index: {}]
  %s1 = inlined_call_operand.vmem [shape: f32[8,8], index: 1, kind: input, shape index: {}]
  %s2 = inlined_call_operand.vmem [shape: f32[8,128], index: 2, kind: input, shape index: {}]
  %s3 = inlined_call_operand.hbm [shape: f32[8,128], index: 3, kind: output, shape index: {}]
  %s4 = sld [smem:[#allocation0]]
  $region30: #{graph_convolution.1} parent=0
    _
  %s6 = ssub.s32 1, %s4
  %s7 = scalar_select 0, %s6, %s4
  %8 = sst [smem:[#allocation2]] %s0
  $region1: #{graph_convolution.1} parent=0
    #allocation3 [shape = 'u8[4096]{0}', space=vmem, size = 0x1000, scoped, tag = 'output window, operand 0, single buffered']
    #allocation4 [shape = 's32[1]{0}', space=sflag, size = 0x4, scoped, tag = 'scoped memory for graph_convolution.1']
    %9 = vsyncpa [#allocation4], 0
    // Predicated region
    $region2: #{graph_convolution.1} parent=1 // pred_check
      _
    $region3: #{graph_convolution.1} parent=1 // pred_check_branch
      %11 = sbr.rel (0) target = $region5
    $region4: #{graph_convolution.1} parent=1 // pred_region
      _
    $region5: #{graph_convolution.1} parent=1 // pred_fallthru
      _
    // Predicated region
    $region6: #{graph_convolution.1} parent=1 // pred_check
      _
    $region7: #{graph_convolution.1} parent=1 // pred_check_branch
      %13 = sbr.rel (0) target = $region9
    $region8: #{graph_convolution.1} parent=1 // pred_region
      _
    $region9: #{graph_convolution.1} parent=1 // pred_fallthru
      _
    // Predicated region
    $region10: #{graph_convolution.1} parent=1 // pred_check
      _
    $region11: #{graph_convolution.1} parent=1 // pred_check_branch
      %15 = sbr.rel (0) target = $region13
    $region12: #{graph_convolution.1} parent=1 // pred_region
      _
    $region13: #{graph_convolution.1} parent=1 // pred_fallthru
      _
    %p16 = scmp.eq.s32.totalorder 0, 0
    // Predicated region
    $region14: #{graph_convolution.1} parent=1 // pred_check
      %p17 = pneg %p16
    $region15: #{graph_convolution.1} parent=1 // pred_check_branch
      %19 = sbr.rel (%p17) target = $region17
    $region16: #{graph_convolution.1} parent=1 // pred_region
      %20 = vst [vmem:[#allocation3] sm:$0xff] 0.0
    $region17: #{graph_convolution.1} parent=1 // pred_fallthru
      _
    %v21 = vld [vmem:[%s2] sm:$0xff]
    %v22 = vld [vmem:[%s1] sm:$0xff]
    %v23 = vld [vmem:[#allocation3] sm:$0xff]
    %vm24 = vcmask 64512
    %v26 = vsel %vm24, %v22, 0
    %28 = vmatprep.subr.mxu0 0.0
    %29 = vmatpush1.msra.mxu0 %v21
    %30 = vmatprep.subr.mxu0 0.0
    %31 = vmatpush1.msra.mxu0 0.0
    %32 = vmatprep.subr.mxu0 0.0
    %33 = vmatpush1.msra.mxu0 0.0
    %34 = vmatprep.subr.mxu0 0.0
    %35 = vmatpush1.msra.mxu0 0.0
    %36 = vmatprep.subr.mxu0 0.0
    %37 = vmatpush1.msra.mxu0 0.0
    %38 = vmatprep.subr.mxu0 0.0
    %39 = vmatpush1.msra.mxu0 0.0
    %40 = vmatprep.subr.mxu0 0.0
    %41 = vmatpush1.msra.mxu0 0.0
    %42 = vmatprep.subr.mxu0 0.0
    %43 = vmatpush1.msra.mxu0 0.0
    %44 = vmatprep.subr.mxu0 0.0
    %45 = vmatpush1.msra.mxu0 0.0
    %46 = vmatprep.subr.mxu0 0.0
    %47 = vmatpush1.msra.mxu0 0.0
    %48 = vmatprep.subr.mxu0 0.0
    %49 = vmatpush1.msra.mxu0 0.0
    %50 = vmatprep.subr.mxu0 0.0
    %51 = vmatpush1.msra.mxu0 0.0
    %52 = vmatprep.subr.mxu0 0.0
    %53 = vmatpush1.msra.mxu0 0.0
    %54 = vmatprep.subr.mxu0 0.0
    %55 = vmatpush1.msra.mxu0 0.0
    %56 = vmatprep.subr.mxu0 0.0
    %57 = vmatpush1.msra.mxu0 0.0
    %58 = vmatprep.subr.mxu0 0.0
    %59 = vmatpush1.msra.mxu0 0.0
    %60 = vmatprep.subr.mxu0 0.0
    %61 = vmatpush1.msra.mxu0 0.0
    %62 = vmatprep.subr.mxu0 0.0
    %63 = vmatpush1.msra.mxu0 0.0
    %64 = vmatprep.subr.mxu0 0.0
    %65 = vmatpush1.msra.mxu0 0.0
    %66 = vmatprep.subr.mxu0 0.0
    %67 = vmatpush1.msra.mxu0 0.0
    %68 = vmatprep.subr.mxu0 0.0
    %69 = vmatpush1.msra.mxu0 0.0
    %70 = vmatprep.subr.mxu0 0.0
    %71 = vmatpush1.msra.mxu0 0.0
    %72 = vmatprep.subr.mxu0 0.0
    %73 = vmatpush1.msra.mxu0 0.0
    %74 = vmatprep.subr.mxu0 0.0
    %75 = vmatpush1.msra.mxu0 0.0
    %76 = vmatprep.subr.mxu0 0.0
    %77 = vmatpush1.msra.mxu0 0.0
    %78 = vmatprep.subr.mxu0 0.0
    %79 = vmatpush1.msra.mxu0 0.0
    %80 = vmatprep.subr.mxu0 0.0
    %81 = vmatpush1.msra.mxu0 0.0
    %82 = vmatprep.subr.mxu0 0.0
    %83 = vmatpush1.msra.mxu0 0.0
    %84 = vmatprep.subr.mxu0 0.0
    %85 = vmatpush1.msra.mxu0 0.0
    %86 = vmatprep.subr.mxu0 0.0
    %87 = vmatpush1.msra.mxu0 0.0
    %88 = vmatprep.subr.mxu0 0.0
    %89 = vmatpush1.msra.mxu0 0.0
    %90 = vmatprep.subr.mxu0 0.0
    %91 = vmatpush1.msra.mxu0 0.0
    %92 = vmatprep.mubr.f32.mxu0 0.0
    %93 = vmatmul.mubr.f32.gmra.mrb[0].mxu0 %v26
    %v94 = vpop.f32.mrb[0].mxu0
    %v95 = vadd.f32 0.0, %v94
    %v96 = vpop.f32.mrb[0].mxu0
    %97 = vdwg.mxu0
    %v98 = vadd.f32 %v23, %v95
    %99 = vst [vmem:[#allocation3] sm:$0xff] %v98
    // Predicated region
    $region18: #{graph_convolution.1} parent=1 // pred_check
      %p100 = pneg %p16
    $region19: #{graph_convolution.1} parent=1 // pred_check_branch
      %102 = sbr.rel (%p100) target = $region21
    $region20: #{graph_convolution.1} parent=1 // pred_region
      %s103 = sld [smem:[#allocation2]]
      %v104 = vld [vmem:[#allocation3] sm:$0xff]
      %vm105 = vcmp.gt.f32.partialorder %v104, 0.0
      %v106 = vstv %s103
      %v107 = vmul.f32 %v106, %v104
      %v108 = vsel %vm105, %v104, %v107
      %109 = vst [vmem:[#allocation3] sm:$0xff] %v108
    $region21: #{graph_convolution.1} parent=1 // pred_fallthru
      _
    // Predicated region
    $region22: #{graph_convolution.1} parent=1 // pred_check
      _
    $region23: #{graph_convolution.1} parent=1 // pred_check_branch
      %111 = sbr.rel (0) target = $region25
    $region24: #{graph_convolution.1} parent=1 // pred_region
      %s113 = ssub.s32 128, 128
      %114 = vsyncadd [#allocation4], %s113
      %s116 = sshll.u32 [#allocation3], 4
      %s117 = int_to_ptr.vmem [resolvable:$true] %s116
      %119 = dma.vmem_to_hbm [thread:$0]  %s117, 128, %s3, [#allocation4]
    $region25: #{graph_convolution.1} parent=1 // pred_fallthru
      _
    // Predicated region
    $region26: #{graph_convolution.1} parent=1 // pred_check
      _
    $region27: #{graph_convolution.1} parent=1 // pred_check_branch
      %121 = sbr.rel (0) target = $region29
    $region28: #{graph_convolution.1} parent=1 // pred_region
      %122 = dma.done [#allocation4], 128
    $region29: #{graph_convolution.1} parent=1 // pred_fallthru
      _
    %123 = vsyncpa [#allocation4], 1

</llo_original>
